<compile_context>
chip_gen: v7x
topology: tpu7x:2x2x1
jax: 0.10.0
libtpu: 0.0.40
codegen_flags: <defaults>
</compile_context>

<pallas_src>
import functools

import jax
import jax.numpy as jnp
from jax import lax
from jax.experimental import pallas as pl
from jax.experimental.pallas import tpu as pltpu

_INV_SQRT2 = 0.7071067811865476


def _round_up(x, m):
    return (x + m - 1) // m * m


def _cdiv(a, b):
    return -(-a // b)


def _gelu_exact(x):
    # erf-based GELU in f32 (matches torch.nn.functional.gelu default).
    return 0.5 * x * (1.0 + lax.erf(x * _INV_SQRT2))


def _vmem_capacity_bytes():
    """Per-TensorCore VMEM capacity; conservative fallback if query fails."""
    try:
        cap = int(pltpu.get_tpu_info().vmem_capacity_bytes)
        if cap > 0:
            return cap
    except Exception:
        pass
    try:
        kind = jax.devices()[0].device_kind.lower()
        if "v7" in kind:
            return 64 << 20
        if any(t in kind for t in ("v4", "v5", "v6")):
            return 128 << 20
    except Exception:
        pass
    return 64 << 20


# --------------------------------------------------------------------------
# Kernels
# --------------------------------------------------------------------------

def _mlp_kernel_stream(x_ref, w1_ref, b1_ref, w2_ref, b2_ref, o_ref, *acc):
    """Streaming path. grid = (token_tiles, hidden_tiles); hidden innermost.

    x_ref:  (tm, in_pad)      token tile (resident across the hidden loop)
    w1_ref: (in_pad, block_h) fc1 weight slab for this hidden tile
    b1_ref: (1, block_h)
    w2_ref: (block_h, o_pad)  fc2 weight slab for this hidden tile
    b2_ref: (1, o_pad)
    o_ref:  (tm, o_pad)       lane-dense output tile
    acc:    optional (tm, o_pad) f32 scratch; f32 outputs accumulate in o_ref.
    """
    acc_ref = acc[0] if acc else o_ref
    k = pl.program_id(1)

    @pl.when(k == 0)
    def _():
        acc_ref[...] = jnp.zeros_like(acc_ref)

    h = jnp.dot(x_ref[...], w1_ref[...], preferred_element_type=jnp.float32)
    h = _gelu_exact(h + b1_ref[...].astype(jnp.float32))
    acc_ref[...] += jnp.dot(h.astype(w2_ref.dtype), w2_ref[...],
                            preferred_element_type=jnp.float32)

    @pl.when(k == pl.num_programs(1) - 1)
    def _():
        o_ref[...] = (acc_ref[...] + b2_ref[...].astype(jnp.float32)
                      ).astype(o_ref.dtype)


def _mlp_kernel_resident(x_ref, w1_ref, b1_ref, w2_ref, b2_ref, o_ref, *acc,
                         block_h, n_h, unroll):
    """Resident-weights path. grid = (token_tiles,).

    Weights live fully in VMEM (constant index_map -> fetched once); the hidden
    dimension is iterated in-kernel in block_h chunks so the (tm, hidden)
    intermediate never materializes at once.
    """
    acc_ref = acc[0] if acc else o_ref
    acc_ref[...] = jnp.zeros_like(acc_ref)

    def body(j, carry):
        off = pl.multiple_of(j * block_h, block_h)
        h = jnp.dot(x_ref[...], w1_ref[:, pl.ds(off, block_h)],
                    preferred_element_type=jnp.float32)
        h = _gelu_exact(h + b1_ref[:, pl.ds(off, block_h)].astype(jnp.float32))
        acc_ref[...] += jnp.dot(h.astype(w2_ref.dtype),
                                w2_ref[pl.ds(off, block_h), :],
                                preferred_element_type=jnp.float32)
        return carry

    lax.fori_loop(0, n_h, body, 0, unroll=unroll)
    o_ref[...] = (acc_ref[...] + b2_ref[...].astype(jnp.float32)
                  ).astype(o_ref.dtype)


# --------------------------------------------------------------------------
# One-time weight prep (outside the hot path)
# --------------------------------------------------------------------------

def prepare_mlp_params(w1, b1, w2, b2, *, block_h=None, weight_dtype=None):
    """Convert torch-layout params (w1: (hidden, in), w2: (out, hidden)) into
    MXU-friendly padded layouts:
      w1_t: (in_pad, h_pad), b1: (1, h_pad), w2_t: (h_pad, o_pad), b2: (1, o_pad)
    in_pad/o_pad are multiples of 128 (full-lane loads / unmasked stores),
    h_pad a multiple of block_h. Zero padding contributes exactly 0.
    weight_dtype=jnp.bfloat16 halves weight HBM traffic and doubles+ MXU rate.
    """
    hidden, in_f = w1.shape
    out_f, hidden2 = w2.shape
    assert hidden == hidden2, "fc1/fc2 hidden dims must match"

    if weight_dtype is not None:
        w1 = w1.astype(weight_dtype)
        w2 = w2.astype(weight_dtype)

    if block_h is None:
        # f32 weights on a 64 MiB-VMEM chip (v7x): halve the hidden slab so the
        # streaming path keeps double-buffering alive. Elsewhere 512.
        f32_w = jnp.dtype(w1.dtype) == jnp.dtype(jnp.float32)
        block_h = 256 if (f32_w and _vmem_capacity_bytes() <= (64 << 20)) else 512
    block_h = _round_up(min(block_h, _round_up(hidden, 128)), 128)

    h_pad = _round_up(hidden, block_h)
    o_pad = _round_up(out_f, 128)
    in_pad = _round_up(in_f, 128)

    w1_t = jnp.zeros((in_pad, h_pad), w1.dtype).at[:in_f, :hidden].set(w1.T)
    b1_p = jnp.zeros((1, h_pad), b1.dtype).at[:, :hidden].set(b1)
    w2_t = jnp.zeros((h_pad, o_pad), w2.dtype).at[:hidden, :out_f].set(w2.T)
    b2_p = jnp.zeros((1, o_pad), b2.dtype).at[:, :out_f].set(b2)
    return (w1_t, b1_p, w2_t, b2_p), dict(out_features=out_f, block_h=block_h)


# --------------------------------------------------------------------------
# Host wrapper
# --------------------------------------------------------------------------

@functools.partial(
    jax.jit,
    static_argnames=("out_features", "block_h", "tm_max", "force_streaming"))
def parallel_mlp(x, w1_t, b1_p, w2_t, b2_p, *, out_features, block_h,
                 tm_max=1024, force_streaming=False):
    """y = gelu(x @ W1^T + b1) @ W2^T + b2, params from prepare_mlp_params."""
    in_f = x.shape[-1]
    in_pad, h_pad = w1_t.shape
    o_pad = w2_t.shape[1]
    out_dtype = x.dtype

    lead = x.shape[:-1]
    x2d = x.reshape(-1, in_f)
    m = x2d.shape[0]
    if in_pad != in_f:
        x2d = jnp.pad(x2d, ((0, 0), (0, in_pad - in_f)))

    isz = jnp.dtype(x.dtype).itemsize
    osz = jnp.dtype(out_dtype).itemsize
    wsz = jnp.dtype(w1_t.dtype).itemsize
    need_acc = jnp.dtype(out_dtype) != jnp.dtype(jnp.float32)

    wbytes = int(w1_t.size * jnp.dtype(w1_t.dtype).itemsize
                 + b1_p.size * jnp.dtype(b1_p.dtype).itemsize
                 + w2_t.size * jnp.dtype(w2_t.dtype).itemsize
                 + b2_p.size * jnp.dtype(b2_p.dtype).itemsize)

    # Generation-aware VMEM budget (128 MiB on v4/v5e/v6e, 64 MiB on v7x),
    # with headroom for the compiler's internal scratch.
    cap = _vmem_capacity_bytes()
    usable = int(cap * 0.8)

    # Resident path: weights (conservatively counted double-buffered) must
    # leave >=40% of the budget for the x/out/acc tiles.
    resident = (not force_streaming) and (2 * wbytes <= int(usable * 0.6))

    # Per-token-row VMEM cost (double-buffered x and out tiles, optional f32
    # accumulator, headroom for the (tm, block_h) f32 intermediate).
    per_row = (2 * in_pad * isz
               + 2 * o_pad * osz
               + (o_pad * 4 if need_acc else 0)
               + block_h * 4)
    if resident:
        fixed = 2 * wbytes
    else:
        fixed = (2 * (in_pad * block_h + block_h * o_pad) * wsz
                 + 4 * (block_h + o_pad))

    # Token tile: as large as the VMEM budget allows (amortizes weight
    # streaming), but split into >=2 tiles (v7x has 2 TensorCores; near-zero
    # cost on single-TC v5e/v6e) and sized from the tile count to minimize
    # padding waste. Sublane multiple respects dtype packing (f32:8, bf16:16).
    sub = 8 * max(1, 4 // isz)
    tm_cap = max(sub, ((usable - fixed) // per_row) // sub * sub)
    tm_max_eff = max(sub, min(tm_max, tm_cap))
    n_tiles = max(2, _cdiv(m, tm_max_eff))
    tm = min(_round_up(_cdiv(m, n_tiles), sub), tm_max_eff)
    m_pad = _round_up(m, tm)
    if m_pad != m:
        x2d = jnp.pad(x2d, ((0, m_pad - m), (0, 0)))
    n_m = m_pad // tm
    n_h = h_pad // block_h

    scratch = [pltpu.VMEM((tm, o_pad), jnp.float32)] if need_acc else []

    vmem_limit = int(min(max(fixed + tm * per_row + (4 << 20), 32 << 20),
                         int(cap * 0.875)))

    # Honest traffic estimate: streaming re-fetches the weights per token tile.
    w_traffic = wbytes if resident else n_m * wbytes
    cost = pl.CostEstimate(
        flops=2 * m_pad * (in_pad * h_pad + h_pad * o_pad),
        transcendentals=m_pad * h_pad,
        bytes_accessed=int(m_pad * in_pad * isz + w_traffic
                           + m_pad * o_pad * osz),
    )

    if resident:
        kernel = functools.partial(_mlp_kernel_resident, block_h=block_h,
                                   n_h=n_h, unroll=(n_h <= 4))
        grid = (n_m,)
        in_specs = [
            pl.BlockSpec((tm, in_pad), lambda i: (i, 0)),
            pl.BlockSpec((in_pad, h_pad), lambda i: (0, 0)),   # resident
            pl.BlockSpec((1, h_pad), lambda i: (0, 0)),        # resident
            pl.BlockSpec((h_pad, o_pad), lambda i: (0, 0)),    # resident
            pl.BlockSpec((1, o_pad), lambda i: (0, 0)),        # resident
        ]
        out_specs = pl.BlockSpec((tm, o_pad), lambda i: (i, 0))
        dims = ("parallel",)
    else:
        kernel = _mlp_kernel_stream
        grid = (n_m, n_h)
        in_specs = [
            pl.BlockSpec((tm, in_pad), lambda i, k: (i, 0)),
            pl.BlockSpec((in_pad, block_h), lambda i, k: (0, k)),
            pl.BlockSpec((1, block_h), lambda i, k: (0, k)),
            pl.BlockSpec((block_h, o_pad), lambda i, k: (k, 0)),
            pl.BlockSpec((1, o_pad), lambda i, k: (0, 0)),
        ]
        out_specs = pl.BlockSpec((tm, o_pad), lambda i, k: (i, 0))
        dims = ("parallel", "arbitrary")

    out = pl.pallas_call(
        kernel,
        out_shape=jax.ShapeDtypeStruct((m_pad, o_pad), out_dtype),
        grid_spec=pltpu.PrefetchScalarGridSpec(
            num_scalar_prefetch=0,
            grid=grid,
            in_specs=in_specs,
            out_specs=out_specs,
            scratch_shapes=scratch,
        ),
        compiler_params=pltpu.CompilerParams(
            dimension_semantics=dims,
            vmem_limit_bytes=vmem_limit,
        ),
        cost_estimate=cost,
    )(x2d, w1_t, b1_p, w2_t, b2_p)

    out = out[:m, :out_features]
    return out.reshape(*lead, out_features)


if __name__ == "__main__":
    # module config: in_features=32, hidden_features=4*32=128, out_features=32
    in_features = 32
    hidden_features = 4 * in_features
    out_features = in_features
    batch, seq = 2, 8

    key = jax.random.PRNGKey(0)
    kx, k1, kb1, k2, kb2 = jax.random.split(key, 5)

    x = jax.random.normal(kx, (batch, seq, in_features), dtype=jnp.float32)
    # torch nn.Linear weight layout: (out, in)
    w1 = jax.random.normal(k1, (hidden_features, in_features), jnp.float32) * 0.05
    b1 = jax.random.normal(kb1, (hidden_features,), jnp.float32) * 0.05
    w2 = jax.random.normal(k2, (out_features, hidden_features), jnp.float32) * 0.05
    b2 = jax.random.normal(kb2, (out_features,), jnp.float32) * 0.05

    # Pure-JAX reference (exact erf GELU == F.gelu default).
    h_ref = x.reshape(-1, in_features) @ w1.T + b1
    h_ref = jax.nn.gelu(h_ref, approximate=False)
    y_ref = (h_ref @ w2.T + b2).reshape(batch, seq, out_features)

    # One-time weight layout prep (outside the jitted hot path).
    (w1_t, b1_p, w2_t, b2_p), meta = prepare_mlp_params(w1, b1, w2, b2)

    # --- f32, resident-weights path (tiny weights live fully in VMEM) ---
    y = parallel_mlp(x, w1_t, b1_p, w2_t, b2_p,
                     out_features=meta["out_features"], block_h=meta["block_h"])
    y = jax.block_until_ready(y)
    assert y.shape == (batch, seq, out_features)
    assert jnp.allclose(y, y_ref, atol=1e-5, rtol=1e-5), "f32 resident mismatch"

    # --- f32, streaming path (exercises the (parallel, arbitrary) grid) ---
    y_s = parallel_mlp(x, w1_t, b1_p, w2_t, b2_p,
                       out_features=meta["out_features"],
                       block_h=meta["block_h"], force_streaming=True)
    y_s = jax.block_until_ready(y_s)
    assert jnp.allclose(y_s, y_ref, atol=1e-5, rtol=1e-5), "f32 streaming mismatch"

    # --- bf16 weights/activations (scratch-accumulator path), loose tolerance ---
    (w1b, b1b, w2b, b2b), mb = prepare_mlp_params(w1, b1, w2, b2,
                                                  weight_dtype=jnp.bfloat16)
    y_bf = parallel_mlp(x.astype(jnp.bfloat16), w1b, b1b, w2b, b2b,
                        out_features=mb["out_features"], block_h=mb["block_h"])
    y_bf = jax.block_until_ready(y_bf)
    assert jnp.allclose(y_bf.astype(jnp.float32), y_ref,
                        atol=5e-2, rtol=5e-2), "bf16 mismatch"

    print("KERNEL_OK")
</pallas_src>

<mosaic_0001>
module attributes {stable_mosaic.version = 11 : i64} {
  func.func @_mlp_kernel_resident(%arg0: i32, %arg1: memref<8x128xf32, #tpu.memory_space<vmem>>, %arg2: memref<128x128xf32, #tpu.memory_space<vmem>>, %arg3: memref<1x128xf32, #tpu.memory_space<vmem>>, %arg4: memref<128x128xf32, #tpu.memory_space<vmem>>, %arg5: memref<1x128xf32, #tpu.memory_space<vmem>>, %arg6: memref<8x128xf32, #tpu.memory_space<vmem>>) attributes {dimension_semantics = [#tpu.dimension_semantics<parallel>], iteration_bounds = array<i64: 2>, scalar_prefetch = 0 : i64, scratch_operands = 0 : i64, tpu.core_type = #tpu.core_type<tc>, window_params = [{transform_indices = @transform_0, window_bounds = array<i64: 8, 128>}, {pipeline_mode = #tpu.pipeline_mode<synchronous>, transform_indices = @transform_1, window_bounds = array<i64: 128, 128>}, {pipeline_mode = #tpu.pipeline_mode<synchronous>, transform_indices = @transform_2, window_bounds = array<i64: 1, 128>}, {pipeline_mode = #tpu.pipeline_mode<synchronous>, transform_indices = @transform_3, window_bounds = array<i64: 128, 128>}, {pipeline_mode = #tpu.pipeline_mode<synchronous>, transform_indices = @transform_4, window_bounds = array<i64: 1, 128>}, {transform_indices = @transform_5, window_bounds = array<i64: 8, 128>}]} {
    %cst = arith.constant 0.000000e+00 : f32
    %0 = vector.broadcast %cst : f32 to vector<8x128xf32>
    %c0 = arith.constant 0 : index
    %c0_0 = arith.constant 0 : index
    %1 = vector.load %arg6[%c0, %c0_0] : memref<8x128xf32, #tpu.memory_space<vmem>>, vector<8x128xf32>
    tpu.vector_store %arg6[%c0, %c0_0], %0 {strides = array<i32>} : memref<8x128xf32, #tpu.memory_space<vmem>>, vector<8x128xf32>,
    %c0_i32 = arith.constant 0 : i32
    %c128_i32 = arith.constant 128 : i32
    %2 = arith.muli %c0_i32, %c128_i32 : i32
    %3 = tpu.assume_multiple %2, 128 : i32
    %c0_1 = arith.constant 0 : index
    %c0_2 = arith.constant 0 : index
    %4 = vector.load %arg1[%c0_1, %c0_2] : memref<8x128xf32, #tpu.memory_space<vmem>>, vector<8x128xf32>
    %c0_3 = arith.constant 0 : index
    %5 = arith.index_cast %3 : i32 to index
    %6 = vector.load %arg2[%c0_3, %5] : memref<128x128xf32, #tpu.memory_space<vmem>>, vector<128x128xf32>
    %cst_4 = arith.constant dense<0.000000e+00> : vector<8x128xf32>
    %7 = tpu.matmul %4, %6, %cst_4 {dimension_numbers = #tpu.dot_dimension_numbers<[1], [0], [0], [1], [0, 0, 1, 1], [], []>} : vector<8x128xf32>, vector<128x128xf32>, vector<8x128xf32> -> vector<8x128xf32>
    %c0_5 = arith.constant 0 : index
    %8 = arith.index_cast %3 : i32 to index
    %9 = vector.load %arg3[%c0_5, %8] : memref<1x128xf32, #tpu.memory_space<vmem>>, vector<1x128xf32>
    %10 = vector.broadcast %9 : vector<1x128xf32> to vector<8x128xf32>
    %11 = arith.addf %7, %10 : vector<8x128xf32>
    %cst_6 = arith.constant 5.000000e-01 : f32
    %12 = vector.broadcast %cst_6 : f32 to vector<8x128xf32>
    %13 = arith.mulf %12, %11 : vector<8x128xf32>
    %cst_7 = arith.constant 0.707106769 : f32
    %14 = vector.broadcast %cst_7 : f32 to vector<8x128xf32>
    %15 = arith.mulf %11, %14 : vector<8x128xf32>
    %16 = math.erf %15 : vector<8x128xf32>
    %cst_8 = arith.constant 1.000000e+00 : f32
    %17 = vector.broadcast %cst_8 : f32 to vector<8x128xf32>
    %18 = arith.addf %17, %16 : vector<8x128xf32>
    %19 = arith.mulf %13, %18 : vector<8x128xf32>
    %c0_9 = arith.constant 0 : index
    %c0_10 = arith.constant 0 : index
    %20 = vector.load %arg6[%c0_9, %c0_10] : memref<8x128xf32, #tpu.memory_space<vmem>>, vector<8x128xf32>
    %21 = arith.index_cast %3 : i32 to index
    %c0_11 = arith.constant 0 : index
    %22 = vector.load %arg4[%21, %c0_11] : memref<128x128xf32, #tpu.memory_space<vmem>>, vector<128x128xf32>
    %cst_12 = arith.constant dense<0.000000e+00> : vector<8x128xf32>
    %23 = tpu.matmul %19, %22, %cst_12 {dimension_numbers = #tpu.dot_dimension_numbers<[1], [0], [0], [1], [0, 0, 1, 1], [], []>} : vector<8x128xf32>, vector<128x128xf32>, vector<8x128xf32> -> vector<8x128xf32>
    %24 = arith.addf %20, %23 : vector<8x128xf32>
    %c0_13 = arith.constant 0 : index
    %c0_14 = arith.constant 0 : index
    %25 = vector.load %arg6[%c0_13, %c0_14] : memref<8x128xf32, #tpu.memory_space<vmem>>, vector<8x128xf32>
    tpu.vector_store %arg6[%c0_13, %c0_14], %24 {strides = array<i32>} : memref<8x128xf32, #tpu.memory_space<vmem>>, vector<8x128xf32>,
    %c1_i32 = arith.constant 1 : i32
    %c0_15 = arith.constant 0 : index
    %c0_16 = arith.constant 0 : index
    %26 = vector.load %arg6[%c0_15, %c0_16] : memref<8x128xf32, #tpu.memory_space<vmem>>, vector<8x128xf32>
    %c0_17 = arith.constant 0 : index
    %c0_18 = arith.constant 0 : index
    %27 = vector.load %arg5[%c0_17, %c0_18] : memref<1x128xf32, #tpu.memory_space<vmem>>, vector<1x128xf32>
    %28 = vector.broadcast %27 : vector<1x128xf32> to vector<8x128xf32>
    %29 = arith.addf %26, %28 : vector<8x128xf32>
    %c0_19 = arith.constant 0 : index
    %c0_20 = arith.constant 0 : index
    %30 = vector.load %arg6[%c0_19, %c0_20] : memref<8x128xf32, #tpu.memory_space<vmem>>, vector<8x128xf32>
    tpu.vector_store %arg6[%c0_19, %c0_20], %29 {strides = array<i32>} : memref<8x128xf32, #tpu.memory_space<vmem>>, vector<8x128xf32>,
    return
  }
  func.func @transform_0(%arg0: i32) -> (i32, i32) {
    %c0_i32 = arith.constant 0 : i32
    %c0_i32_0 = arith.constant 0 : i32
    return %arg0, %c0_i32 : i32, i32
  }
  func.func @transform_1(%arg0: i32) -> (i32, i32) {
    %c0_i32 = arith.constant 0 : i32
    %c0_i32_0 = arith.constant 0 : i32
    %c0_i32_1 = arith.constant 0 : i32
    return %c0_i32, %c0_i32_0 : i32, i32
  }
  func.func @transform_2(%arg0: i32) -> (i32, i32) {
    %c0_i32 = arith.constant 0 : i32
    %c0_i32_0 = arith.constant 0 : i32
    %c0_i32_1 = arith.constant 0 : i32
    return %c0_i32, %c0_i32_0 : i32, i32
  }
  func.func @transform_3(%arg0: i32) -> (i32, i32) {
    %c0_i32 = arith.constant 0 : i32
    %c0_i32_0 = arith.constant 0 : i32
    %c0_i32_1 = arith.constant 0 : i32
    return %c0_i32, %c0_i32_0 : i32, i32
  }
  func.func @transform_4(%arg0: i32) -> (i32, i32) {
    %c0_i32 = arith.constant 0 : i32
    %c0_i32_0 = arith.constant 0 : i32
    %c0_i32_1 = arith.constant 0 : i32
    return %c0_i32, %c0_i32_0 : i32, i32
  }
  func.func @transform_5(%arg0: i32) -> (i32, i32) {
    %c0_i32 = arith.constant 0 : i32
    %c0_i32_0 = arith.constant 0 : i32
    return %arg0, %c0_i32 : i32, i32
  }
}

</mosaic_0001>

<llo_original>
// kernel: parallel_mlp.1
$region0: #{parallel_mlp.1}
  #allocation0 [shape = 'u32[]', space=smem, size = 0x4, offset = 0x4, fixed_abs, tag = 'smem constant byte address 0x4 - core index']
  #allocation1 [shape = 'u32[144,128]{1,0:T(1,128)}', space=vmem, size = 0x12000, scoped, tag = 'internal scratch']
  %s0 = inlined_call_operand.vmem [shape: f32[16,128], index: 0, kind: input, shape index: {}]
  %s1 = inlined_call_operand.hbm [shape: f32[128,128], index: 1, kind: input, shape index: {}]
  %s2 = inlined_call_operand.vmem [shape: f32[1,128], index: 2, kind: input, shape index: {}]
  %s3 = inlined_call_operand.hbm [shape: f32[128,128], index: 3, kind: input, shape index: {}]
  %s4 = inlined_call_operand.vmem [shape: f32[1,128], index: 4, kind: input, shape index: {}]
  %s5 = inlined_call_operand.vmem [shape: f32[16,128], index: 5, kind: output, shape index: {}]
  %s6 = sld [smem:[#allocation0]]
  $region61: #{parallel_mlp.1} parent=0
    _
  %s8 = ssub.s32 1, %s6
  %s9 = scalar_select 0, %s8, %s6
  $region1: #{parallel_mlp.1} parent=0
    #allocation2 [shape = 'u8[65536]{0}', space=vmem, size = 0x10000, scoped, tag = 'input window, operand 1, single buffered']
    #allocation3 [shape = 's32[2]{0}', space=sflag, size = 0x8, scoped, tag = 'scoped memory for parallel_mlp.1']
    #allocation4 [shape = 'u8[65536]{0}', space=vmem, size = 0x10000, scoped, tag = 'input window, operand 3, single buffered']
    #allocation5 [shape = 's32[1]{0}', space=sflag, size = 0x4, scoped, tag = 'scoped memory for parallel_mlp.1']
    %10 = vsyncpa [#allocation3], 0
    %11 = vsyncpa [#allocation5], 0
    loop: start=0, step=1, limit=4
    $region2: #{parallel_mlp.1} parent=1 // loop_pre_header
      _
    $region3: #{parallel_mlp.1} parent=1 // loop_header
      %s13 = sphi 0, %s17
      %p14 = scmp.ge.s32.totalorder %s13, 4
      %s23 = sphi 0, %s25
      %s26 = sphi 0, %s23
      %s27 = sphi 0, %s26
      %s43 = sphi 0, %s27
      %s47 = sphi 0, %s47
      %s49 = sphi 0, %s47
      %s50 = sphi 0, %s49
      %s64 = sphi 0, %s50
      %s68 = sphi 0, %s68
      %s70 = sphi 0, %s68
      %s71 = sphi 0, %s70
      %s85 = sphi 0, %s71
      %s89 = sphi 0, %s89
      %s91 = sphi 0, %s89
      %s92 = sphi 0, %s91
      %s106 = sphi 0, %s92
      %s110 = sphi 0, %s110
      %s112 = sphi 0, %s110
      %s113 = sphi 0, %s112
      %s127 = sphi 0, %s113
      %s133 = sphi 0, %s135
      %s136 = sphi 0, %s133
      %s137 = sphi 0, %s136
      %s153 = sphi 0, %s137
    $region4: #{parallel_mlp.1} parent=1 // loop_header_branch
      %16 = sbr.rel (%p14) target = $region8
    $region5: #{parallel_mlp.1} parent=1 // loop_body
      %s18 = ssub.s32 %s13, 1
      %s19 = ssub.s32 %s13, 2
      %s20 = sadd.s32 %s13, 1
      %s21 = ssub.s32 %s13, %s20
      %p22 = scmp.eq.s32.totalorder %s21, 0
      %s24 = sadd.s32 %s23, 1
      %s25 = scalar_select %p22, %s23, %s24
      %p28 = pneg %p22
      %p29 = scmp.eq.s32.totalorder %s13, 1
      %p30 = por %p28, %p29
      %p31 = scmp.ne.s32.totalorder %s23, %s26
      %p32 = scmp.eq.s32.totalorder %s13, 0
      %p33 = por %p31, %p32
      %p34 = scmp.ne.s32.totalorder %s23, %s26
      %p35 = scmp.eq.s32.totalorder %s18, 1
      %p36 = por %p34, %p35
      %p37 = scmp.ne.s32.totalorder %s26, %s27
      %p38 = scmp.eq.s32.totalorder %s18, 0
      %p39 = por %p37, %p38
      %p40 = scmp.ne.s32.totalorder %s26, %s27
      %p41 = scmp.eq.s32.totalorder %s19, 1
      %p42 = por %p40, %p41
      %p44 = scmp.ne.s32.totalorder %s27, %s43
      %p45 = scmp.eq.s32.totalorder %s19, 0
      %p46 = por %p44, %p45
      %s48 = sadd.s32 %s47, 1
      %p51 = scmp.eq.s32.totalorder %s13, 1
      %p52 = scmp.ne.s32.totalorder %s47, %s49
      %p53 = scmp.eq.s32.totalorder %s13, 0
      %p54 = por %p52, %p53
      %p55 = scmp.ne.s32.totalorder %s47, %s49
      %p56 = scmp.eq.s32.totalorder %s18, 1
      %p57 = por %p55, %p56
      %p58 = scmp.ne.s32.totalorder %s49, %s50
      %p59 = scmp.eq.s32.totalorder %s18, 0
      %p60 = por %p58, %p59
      %p61 = scmp.ne.s32.totalorder %s49, %s50
      %p62 = scmp.eq.s32.totalorder %s19, 1
      %p63 = por %p61, %p62
      %p65 = scmp.ne.s32.totalorder %s50, %s64
      %p66 = scmp.eq.s32.totalorder %s19, 0
      %p67 = por %p65, %p66
      %s69 = sadd.s32 %s68, 1
      %p72 = scmp.eq.s32.totalorder %s13, 1
      %p73 = scmp.ne.s32.totalorder %s68, %s70
      %p74 = scmp.eq.s32.totalorder %s13, 0
      %p75 = por %p73, %p74
      %p76 = scmp.ne.s32.totalorder %s68, %s70
      %p77 = scmp.eq.s32.totalorder %s18, 1
      %p78 = por %p76, %p77
      %p79 = scmp.ne.s32.totalorder %s70, %s71
      %p80 = scmp.eq.s32.totalorder %s18, 0
      %p81 = por %p79, %p80
      %p82 = scmp.ne.s32.totalorder %s70, %s71
      %p83 = scmp.eq.s32.totalorder %s19, 1
      %p84 = por %p82, %p83
      %p86 = scmp.ne.s32.totalorder %s71, %s85
      %p87 = scmp.eq.s32.totalorder %s19, 0
      %p88 = por %p86, %p87
      %s90 = sadd.s32 %s89, 1
      %p93 = scmp.eq.s32.totalorder %s13, 1
      %p94 = scmp.ne.s32.totalorder %s89, %s91
      %p95 = scmp.eq.s32.totalorder %s13, 0
      %p96 = por %p94, %p95
      %p97 = scmp.ne.s32.totalorder %s89, %s91
      %p98 = scmp.eq.s32.totalorder %s18, 1
      %p99 = por %p97, %p98
      %p100 = scmp.ne.s32.totalorder %s91, %s92
      %p101 = scmp.eq.s32.totalorder %s18, 0
      %p102 = por %p100, %p101
      %p103 = scmp.ne.s32.totalorder %s91, %s92
      %p104 = scmp.eq.s32.totalorder %s19, 1
      %p105 = por %p103, %p104
      %p107 = scmp.ne.s32.totalorder %s92, %s106
      %p108 = scmp.eq.s32.totalorder %s19, 0
      %p109 = por %p107, %p108
      %s111 = sadd.s32 %s110, 1
      %p114 = scmp.eq.s32.totalorder %s13, 1
      %p115 = scmp.ne.s32.totalorder %s110, %s112
      %p116 = scmp.eq.s32.totalorder %s13, 0
      %p117 = por %p115, %p116
      %p118 = scmp.ne.s32.totalorder %s110, %s112
      %p119 = scmp.eq.s32.totalorder %s18, 1
      %p120 = por %p118, %p119
      %p121 = scmp.ne.s32.totalorder %s112, %s113
      %p122 = scmp.eq.s32.totalorder %s18, 0
      %p123 = por %p121, %p122
      %p124 = scmp.ne.s32.totalorder %s112, %s113
      %p125 = scmp.eq.s32.totalorder %s19, 1
      %p126 = por %p124, %p125
      %p128 = scmp.ne.s32.totalorder %s113, %s127
      %p129 = scmp.eq.s32.totalorder %s19, 0
      %p130 = por %p128, %p129
      %s131 = ssub.s32 %s13, %s20
      %p132 = scmp.eq.s32.totalorder %s131, 0
      %s134 = sadd.s32 %s133, 1
      %s135 = scalar_select %p132, %s133, %s134
      %p138 = pneg %p132
      %p139 = scmp.eq.s32.totalorder %s13, 1
      %p140 = por %p138, %p139
      %p141 = scmp.ne.s32.totalorder %s133, %s136
      %p142 = scmp.eq.s32.totalorder %s13, 0
      %p143 = por %p141, %p142
      %p144 = scmp.ne.s32.totalorder %s133, %s136
      %p145 = scmp.eq.s32.totalorder %s18, 1
      %p146 = por %p144, %p145
      %p147 = scmp.ne.s32.totalorder %s136, %s137
      %p148 = scmp.eq.s32.totalorder %s18, 0
      %p149 = por %p147, %p148
      %p150 = scmp.ne.s32.totalorder %s136, %s137
      %p151 = scmp.eq.s32.totalorder %s19, 1
      %p152 = por %p150, %p151
      %p154 = scmp.ne.s32.totalorder %s137, %s153
      %p155 = scmp.eq.s32.totalorder %s19, 0
      %p156 = por %p154, %p155
      %p157 = scmp.le.s32.totalorder 1, %s13
      %p158 = scmp.lt.s32.totalorder %s13, 3
      %p159 = pnand %p157, %p158
      %p160 = pneg %p159
      // Predicated region
      $region9: #{parallel_mlp.1} parent=5 // pred_check
        _
      $region10: #{parallel_mlp.1} parent=5 // pred_check_branch
        %162 = sbr.rel (%p159) target = $region12
      $region11: #{parallel_mlp.1} parent=5 // pred_region
        %s163 = ssub.s32 %s13, 1
        // Predicated region
        $region13: #{parallel_mlp.1} parent=11 // pred_check
          %p164 = pneg %p60
        $region14: #{parallel_mlp.1} parent=11 // pred_check_branch
          %166 = sbr.rel (%p164) target = $region16
        $region15: #{parallel_mlp.1} parent=11 // pred_region
          %s168 = ssub.s32 2048, 2048
          %169 = vsyncadd [#allocation3], %s168
          %s170 = sshll.u32 [#allocation2], 4
          %s171 = int_to_ptr.vmem [resolvable:$true] %s170
          %176 = dma.hbm_to_vmem [thread:$0]  %s1, 2048, %s171, [#allocation3], 128, 128, 8
        $region16: #{parallel_mlp.1} parent=11 // pred_fallthru
          _
        // Predicated region
        $region17: #{parallel_mlp.1} parent=11 // pred_check
          %p177 = pneg %p81
        $region18: #{parallel_mlp.1} parent=11 // pred_check_branch
          %179 = sbr.rel (%p177) target = $region20
        $region19: #{parallel_mlp.1} parent=11 // pred_region
          _
        $region20: #{parallel_mlp.1} parent=11 // pred_fallthru
          _
        // Predicated region
        $region21: #{parallel_mlp.1} parent=11 // pred_check
          %p180 = pneg %p102
        $region22: #{parallel_mlp.1} parent=11 // pred_check_branch
          %182 = sbr.rel (%p180) target = $region24
        $region23: #{parallel_mlp.1} parent=11 // pred_region
          %s184 = ssub.s32 2048, 2048
          %185 = vsyncadd [#allocation5], %s184
          %s186 = sshll.u32 [#allocation4], 4
          %s187 = int_to_ptr.vmem [resolvable:$true] %s186
          %192 = dma.hbm_to_vmem [thread:$0]  %s3, 2048, %s187, [#allocation5], 128, 128, 8
        $region24: #{parallel_mlp.1} parent=11 // pred_fallthru
          _
        // Predicated region
        $region25: #{parallel_mlp.1} parent=11 // pred_check
          %p193 = pneg %p123
        $region26: #{parallel_mlp.1} parent=11 // pred_check_branch
          %195 = sbr.rel (%p193) target = $region28
        $region27: #{parallel_mlp.1} parent=11 // pred_region
          _
        $region28: #{parallel_mlp.1} parent=11 // pred_fallthru
          _
      $region12: #{parallel_mlp.1} parent=5 // pred_fallthru
        _
      %p196 = scmp.lt.s32.totalorder %s13, 2
      // Predicated region
      $region29: #{parallel_mlp.1} parent=5 // pred_check
        %p197 = pneg %p196
      $region30: #{parallel_mlp.1} parent=5 // pred_check_branch
        %199 = sbr.rel (%p197) target = $region32
      $region31: #{parallel_mlp.1} parent=5 // pred_region
        // Predicated region
        $region33: #{parallel_mlp.1} parent=31 // pred_check
          %p200 = pneg %p33
        $region34: #{parallel_mlp.1} parent=31 // pred_check_branch
          %202 = sbr.rel (%p200) target = $region36
        $region35: #{parallel_mlp.1} parent=31 // pred_region
          %p203 = scmp.lt.s32.totalorder %s13, 1
          %s204 = scalar_select %p203, %s13, 1
          %s205 = smul.addr %s204, 8
          %s206 = scalar_lea.vmem %s0, %s205
        $region36: #{parallel_mlp.1} parent=31 // pred_fallthru
          _
      $region32: #{parallel_mlp.1} parent=5 // pred_fallthru
        _
      %p207 = scmp.le.s32.totalorder 1, %s13
      %p208 = scmp.lt.s32.totalorder %s13, 3
      %p209 = pnand %p207, %p208
      %p210 = pneg %p209
      // Predicated region
      $region37: #{parallel_mlp.1} parent=5 // pred_check
        _
      $region38: #{parallel_mlp.1} parent=5 // pred_check_branch
        %212 = sbr.rel (%p209) target = $region40
      $region39: #{parallel_mlp.1} parent=5 // pred_region
        %s213 = ssub.s32 %s13, 1
        // Predicated region
        $region41: #{parallel_mlp.1} parent=39 // pred_check
          %p214 = pneg %p60
        $region42: #{parallel_mlp.1} parent=39 // pred_check_branch
          %216 = sbr.rel (%p214) target = $region44
        $region43: #{parallel_mlp.1} parent=39 // pred_region
          %217 = dma.done [#allocation3], 2048
        $region44: #{parallel_mlp.1} parent=39 // pred_fallthru
          _
        // Predicated region
        $region45: #{parallel_mlp.1} parent=39 // pred_check
          %p218 = pneg %p102
        $region46: #{parallel_mlp.1} parent=39 // pred_check_branch
          %220 = sbr.rel (%p218) target = $region48
        $region47: #{parallel_mlp.1} parent=39 // pred_region
          %221 = dma.done [#allocation5], 2048
        $region48: #{parallel_mlp.1} parent=39 // pred_fallthru
          _
        %p222 = scmp.lt.s32.totalorder %s18, 1
        %s223 = scalar_select %p222, %s18, 1
        %s224 = smul.addr %s223, 8
        %s225 = scalar_lea.vmem %s0, %s224
        %p226 = pneg %p39
        %p227 = pneg %p36
        %p228 = pneg %p60
        %p229 = pneg %p57
        %p230 = pneg %p81
        %p231 = pneg %p78
        %p232 = pneg %p102
        %p233 = pneg %p99
        %p234 = pneg %p123
        %p235 = pneg %p120
        %p236 = pneg %p149
        %p237 = pneg %p146
        %p238 = scmp.lt.s32.totalorder %s18, 1
        %s239 = scalar_select %p238, %s18, 1
        %s240 = smul.addr %s239, 8
        %s241 = scalar_lea.vmem %s5, %s240
        %p242 = scmp.lt.s32.totalorder %s18, 1
        %s243 = scalar_select %p242, %s18, 1
        %s244 = smul.addr %s243, 8
        %s245 = scalar_lea.vmem %s0, %s244
        %p246 = scmp.lt.s32.totalorder %s18, 1
        %s247 = scalar_select %p246, %s18, 1
        %s248 = smul.addr %s247, 8
        %s249 = scalar_lea.vmem %s5, %s248
        %250 = vst [vmem:[%s249] sm:$0xff] 0.0
        %v251 = vld [vmem:[%s245] sm:$0xff]
        %v252 = vld [vmem:[#allocation2] sm:$0xff]
        %v253 = vld [vmem:[#allocation2 + $0x8] sm:$0xff]
        %v254 = vld [vmem:[#allocation2 + $0x10] sm:$0xff]
        %v255 = vld [vmem:[#allocation2 + $0x18] sm:$0xff]
        %v256 = vld [vmem:[#allocation2 + $0x20] sm:$0xff]
        %v257 = vld [vmem:[#allocation2 + $0x28] sm:$0xff]
        %v258 = vld [vmem:[#allocation2 + $0x30] sm:$0xff]
        %v259 = vld [vmem:[#allocation2 + $0x38] sm:$0xff]
        %v260 = vld [vmem:[#allocation2 + $0x40] sm:$0xff]
        %v261 = vld [vmem:[#allocation2 + $0x48] sm:$0xff]
        %v262 = vld [vmem:[#allocation2 + $0x50] sm:$0xff]
        %v263 = vld [vmem:[#allocation2 + $0x58] sm:$0xff]
        %v264 = vld [vmem:[#allocation2 + $0x60] sm:$0xff]
        %v265 = vld [vmem:[#allocation2 + $0x68] sm:$0xff]
        %v266 = vld [vmem:[#allocation2 + $0x70] sm:$0xff]
        %v267 = vld [vmem:[#allocation2 + $0x78] sm:$0xff]
        %v268 = vld [vmem:[%s2] sm:$0x1]
        %v270 = vlaneseq
        %v271 = vshrl.u32 %v270, 7
        %v272 = vsub.s32 0, %v271
        %v273 = vrot.slane %v268, %v272
        %275 = vmatprep.subr.mxu0 0.0
        %276 = vmatpush1.msra.mxu0 %v252
        %277 = vmatprep.subr.mxu0 0.0
        %278 = vmatpush1.msra.mxu0 %v253
        %279 = vmatprep.subr.mxu0 0.0
        %280 = vmatpush1.msra.mxu0 %v254
        %281 = vmatprep.subr.mxu0 0.0
        %282 = vmatpush1.msra.mxu0 %v255
        %283 = vmatprep.subr.mxu0 0.0
        %284 = vmatpush1.msra.mxu0 %v256
        %285 = vmatprep.subr.mxu0 0.0
        %286 = vmatpush1.msra.mxu0 %v257
        %287 = vmatprep.subr.mxu0 0.0
        %288 = vmatpush1.msra.mxu0 %v258
        %289 = vmatprep.subr.mxu0 0.0
        %290 = vmatpush1.msra.mxu0 %v259
        %291 = vmatprep.subr.mxu0 0.0
        %292 = vmatpush1.msra.mxu0 %v260
        %293 = vmatprep.subr.mxu0 0.0
        %294 = vmatpush1.msra.mxu0 %v261
        %295 = vmatprep.subr.mxu0 0.0
        %296 = vmatpush1.msra.mxu0 %v262
        %297 = vmatprep.subr.mxu0 0.0
        %298 = vmatpush1.msra.mxu0 %v263
        %299 = vmatprep.subr.mxu0 0.0
        %300 = vmatpush1.msra.mxu0 %v264
        %301 = vmatprep.subr.mxu0 0.0
        %302 = vmatpush1.msra.mxu0 %v265
        %303 = vmatprep.subr.mxu0 0.0
        %304 = vmatpush1.msra.mxu0 %v266
        %305 = vmatprep.subr.mxu0 0.0
        %306 = vmatpush1.msra.mxu0 %v267
        %307 = vmatprep.subr.mxu0 0.0
        %308 = vmatpush1.msra.mxu0 0.0
        %309 = vmatprep.subr.mxu0 0.0
        %310 = vmatpush1.msra.mxu0 0.0
        %311 = vmatprep.subr.mxu0 0.0
        %312 = vmatpush1.msra.mxu0 0.0
        %313 = vmatprep.subr.mxu0 0.0
        %314 = vmatpush1.msra.mxu0 0.0
        %315 = vmatprep.subr.mxu0 0.0
        %316 = vmatpush1.msra.mxu0 0.0
        %317 = vmatprep.subr.mxu0 0.0
        %318 = vmatpush1.msra.mxu0 0.0
        %319 = vmatprep.subr.mxu0 0.0
        %320 = vmatpush1.msra.mxu0 0.0
        %321 = vmatprep.subr.mxu0 0.0
        %322 = vmatpush1.msra.mxu0 0.0
        %323 = vmatprep.subr.mxu0 0.0
        %324 = vmatpush1.msra.mxu0 0.0
        %325 = vmatprep.subr.mxu0 0.0
        %326 = vmatpush1.msra.mxu0 0.0
        %327 = vmatprep.subr.mxu0 0.0
        %328 = vmatpush1.msra.mxu0 0.0
        %329 = vmatprep.subr.mxu0 0.0
        %330 = vmatpush1.msra.mxu0 0.0
        %331 = vmatprep.subr.mxu0 0.0
        %332 = vmatpush1.msra.mxu0 0.0
        %333 = vmatprep.subr.mxu0 0.0
        %334 = vmatpush1.msra.mxu0 0.0
        %335 = vmatprep.subr.mxu0 0.0
        %336 = vmatpush1.msra.mxu0 0.0
        %337 = vmatprep.subr.mxu0 0.0
        %338 = vmatpush1.msra.mxu0 0.0
        %339 = vmatprep.mubr.f32.mxu0 0.0
        %340 = vmatmul.mubr.f32.gmra.mrb[0].mxu0 %v251
        %v341 = vpop.f32.mrb[0].mxu0
        %v342 = vadd.f32 %v273, %v341
        %v343 = vpop.f32.mrb[0].mxu0
        %344 = vdwg.mxu0
        %v345 = vmul.f32 %v342, 0.5
        %v346 = vmul.f32 %v342, 0.70710677
        %v347 = verf.f32.pop %v346
        %v348 = vadd.f32 %v347, 1.0
        %v349 = vmul.f32 %v345, %v348
        %v350 = vld [vmem:[%s249] sm:$0xff]
        %v351 = vld [vmem:[#allocation4] sm:$0xff]
        %v352 = vld [vmem:[#allocation4 + $0x8] sm:$0xff]
        %v353 = vld [vmem:[#allocation4 + $0x10] sm:$0xff]
        %v354 = vld [vmem:[#allocation4 + $0x18] sm:$0xff]
        %v355 = vld [vmem:[#allocation4 + $0x20] sm:$0xff]
        %v356 = vld [vmem:[#allocation4 + $0x28] sm:$0xff]
        %v357 = vld [vmem:[#allocation4 + $0x30] sm:$0xff]
        %v358 = vld [vmem:[#allocation4 + $0x38] sm:$0xff]
        %v359 = vld [vmem:[#allocation4 + $0x40] sm:$0xff]
        %v360 = vld [vmem:[#allocation4 + $0x48] sm:$0xff]
        %v361 = vld [vmem:[#allocation4 + $0x50] sm:$0xff]
        %v362 = vld [vmem:[#allocation4 + $0x58] sm:$0xff]
        %v363 = vld [vmem:[#allocation4 + $0x60] sm:$0xff]
        %v364 = vld [vmem:[#allocation4 + $0x68] sm:$0xff]
        %v365 = vld [vmem:[#allocation4 + $0x70] sm:$0xff]
        %v366 = vld [vmem:[#allocation4 + $0x78] sm:$0xff]
        %367 = vmatprep.subr.mxu0 0.0
        %368 = vmatpush1.msra.mxu0 %v351
        %369 = vmatprep.subr.mxu0 0.0
        %370 = vmatpush1.msra.mxu0 %v352
        %371 = vmatprep.subr.mxu0 0.0
        %372 = vmatpush1.msra.mxu0 %v353
        %373 = vmatprep.subr.mxu0 0.0
        %374 = vmatpush1.msra.mxu0 %v354
        %375 = vmatprep.subr.mxu0 0.0
        %376 = vmatpush1.msra.mxu0 %v355
        %377 = vmatprep.subr.mxu0 0.0
        %378 = vmatpush1.msra.mxu0 %v356
        %379 = vmatprep.subr.mxu0 0.0
        %380 = vmatpush1.msra.mxu0 %v357
        %381 = vmatprep.subr.mxu0 0.0
        %382 = vmatpush1.msra.mxu0 %v358
        %383 = vmatprep.subr.mxu0 0.0
        %384 = vmatpush1.msra.mxu0 %v359
        %385 = vmatprep.subr.mxu0 0.0
        %386 = vmatpush1.msra.mxu0 %v360
        %387 = vmatprep.subr.mxu0 0.0
        %388 = vmatpush1.msra.mxu0 %v361
        %389 = vmatprep.subr.mxu0 0.0
        %390 = vmatpush1.msra.mxu0 %v362
        %391 = vmatprep.subr.mxu0 0.0
        %392 = vmatpush1.msra.mxu0 %v363
        %393 = vmatprep.subr.mxu0 0.0
        %394 = vmatpush1.msra.mxu0 %v364
        %395 = vmatprep.subr.mxu0 0.0
        %396 = vmatpush1.msra.mxu0 %v365
        %397 = vmatprep.subr.mxu0 0.0
        %398 = vmatpush1.msra.mxu0 %v366
        %399 = vmatprep.subr.mxu0 0.0
        %400 = vmatpush1.msra.mxu0 0.0
        %401 = vmatprep.subr.mxu0 0.0
        %402 = vmatpush1.msra.mxu0 0.0
        %403 = vmatprep.subr.mxu0 0.0
        %404 = vmatpush1.msra.mxu0 0.0
        %405 = vmatprep.subr.mxu0 0.0
        %406 = vmatpush1.msra.mxu0 0.0
        %407 = vmatprep.subr.mxu0 0.0
        %408 = vmatpush1.msra.mxu0 0.0
        %409 = vmatprep.subr.mxu0 0.0
        %410 = vmatpush1.msra.mxu0 0.0
        %411 = vmatprep.subr.mxu0 0.0
        %412 = vmatpush1.msra.mxu0 0.0
        %413 = vmatprep.subr.mxu0 0.0
        %414 = vmatpush1.msra.mxu0 0.0
        %415 = vmatprep.subr.mxu0 0.0
        %416 = vmatpush1.msra.mxu0 0.0
        %417 = vmatprep.subr.mxu0 0.0
        %418 = vmatpush1.msra.mxu0 0.0
        %419 = vmatprep.subr.mxu0 0.0
        %420 = vmatpush1.msra.mxu0 0.0
        %421 = vmatprep.subr.mxu0 0.0
        %422 = vmatpush1.msra.mxu0 0.0
        %423 = vmatprep.subr.mxu0 0.0
        %424 = vmatpush1.msra.mxu0 0.0
        %425 = vmatprep.subr.mxu0 0.0
        %426 = vmatpush1.msra.mxu0 0.0
        %427 = vmatprep.subr.mxu0 0.0
        %428 = vmatpush1.msra.mxu0 0.0
        %429 = vmatprep.subr.mxu0 0.0
        %430 = vmatpush1.msra.mxu0 0.0
        %431 = vmatprep.mubr.f32.mxu0 0.0
        %432 = vmatmul.mubr.f32.gmra.mrb[0].mxu0 %v349
        %v433 = vpop.f32.mrb[0].mxu0
        %v434 = vadd.f32 0.0, %v433
        %v435 = vpop.f32.mrb[0].mxu0
        %436 = vdwg.mxu0
        %v437 = vadd.f32 %v350, %v434
        %438 = vst [vmem:[%s249] sm:$0xff] %v437
        %v439 = vld [vmem:[%s249] sm:$0xff]
        %v440 = vld [vmem:[%s4] sm:$0x1]
        %v442 = vlaneseq
        %v443 = vshrl.u32 %v442, 7
        %v444 = vsub.s32 0, %v443
        %v445 = vrot.slane %v440, %v444
        %v447 = vadd.f32 %v439, %v445
        %448 = vst [vmem:[%s249] sm:$0xff] %v447
        %p449 = scmp.lt.s32.totalorder %s18, 1
        %s450 = scalar_select %p449, %s18, 1
        %s451 = smul.addr %s450, 8
        %s452 = scalar_lea.vmem %s5, %s451
        // Predicated region
        $region49: #{parallel_mlp.1} parent=39 // pred_check
          %p453 = pneg %p146
        $region50: #{parallel_mlp.1} parent=39 // pred_check_branch
          %455 = sbr.rel (%p453) target = $region52
        $region51: #{parallel_mlp.1} parent=39 // pred_region
          _
        $region52: #{parallel_mlp.1} parent=39 // pred_fallthru
          _
      $region40: #{parallel_mlp.1} parent=5 // pred_fallthru
        _
      %p456 = scmp.le.s32.totalorder 2, %s13
      // Predicated region
      $region53: #{parallel_mlp.1} parent=5 // pred_check
        %p457 = pneg %p456
      $region54: #{parallel_mlp.1} parent=5 // pred_check_branch
        %459 = sbr.rel (%p457) target = $region56
      $region55: #{parallel_mlp.1} parent=5 // pred_region
        %s460 = ssub.s32 %s13, 2
        // Predicated region
        $region57: #{parallel_mlp.1} parent=55 // pred_check
          %p461 = pneg %p152
        $region58: #{parallel_mlp.1} parent=55 // pred_check_branch
          %463 = sbr.rel (%p461) target = $region60
        $region59: #{parallel_mlp.1} parent=55 // pred_region
          %p464 = scmp.lt.s32.totalorder %s19, 1
          %s465 = scalar_select %p464, %s19, 1
          %s466 = smul.addr %s465, 8
          %s467 = scalar_lea.vmem %s5, %s466
        $region60: #{parallel_mlp.1} parent=55 // pred_fallthru
          _
      $region56: #{parallel_mlp.1} parent=5 // pred_fallthru
        _
    $region6: #{parallel_mlp.1} parent=1 // loop_footer
      %s17 = sadd.s32 1, %s13
    $region7: #{parallel_mlp.1} parent=1 // loop_footer_branch
      %12 = sbr.rel target = $region3
    $region8: #{parallel_mlp.1} parent=1 // loop_exit
      _
    %468 = vsyncpa [#allocation3], 1
    %s469 = scalar_lea.sflag [#allocation3], 1
    %470 = vsyncpa %s469, 1
    %471 = vsyncpa [#allocation5], 1

</llo_original>
